<compile_context>
chip_gen: v7x
topology: tpu7x:2x2x1
jax: 0.10.0
libtpu: 0.0.40
codegen_flags: <defaults>
</compile_context>

<pallas_src>
import math

import jax
import jax.numpy as jnp
from jax.experimental import pallas as pl
from jax.experimental.pallas import tpu as pltpu


def build_pe_table(d_model: int, max_length: int = 5000) -> jnp.ndarray:
    """Mirror of the torch buffer construction in PositionalEncoding.__init__."""
    position = jnp.arange(0, max_length, dtype=jnp.float32)[:, None]          # (L, 1)
    div_term = jnp.exp(
        jnp.arange(0, d_model, 2, dtype=jnp.float32)
        * -(math.log(10000.0) / d_model)
    )                                                                          # (D/2,)
    ang = position * div_term                                                  # (L, D/2)
    pe = jnp.zeros((max_length, d_model), dtype=jnp.float32)
    pe = pe.at[:, 0::2].set(jnp.sin(ang))
    pe = pe.at[:, 1::2].set(jnp.cos(ang))
    return pe                                                                  # (L, D)


def _hw_budgets():
    """Generation-aware (max_block_bytes, vmem_limit_bytes)."""
    vmem_cap = None
    try:
        info = pltpu.get_tpu_info()
        vmem_cap = getattr(info, "vmem_capacity_bytes", None)
    except Exception:
        vmem_cap = None
    if vmem_cap is None:
        vmem_cap = 64 << 20                       # conservative: v7x per-TC VMEM
    if vmem_cap >= (96 << 20):                    # v5e / v6e: 128 MiB VMEM
        return 4 << 20, 64 << 20
    return 2 << 20, 40 << 20                      # v7x: 64 MiB VMEM per TC


def _round_up(n: int, m: int) -> int:
    return -(-n // m) * m


def _plan_layout(flat: int, dtype, batch: int, max_block_bytes: int):
    """Pick (C, tR, Rp, n_row_tiles): C % 128 == 0, tR % pack == 0, Rp % tR == 0."""
    itemsize = jnp.dtype(dtype).itemsize
    pack = max(8, 32 // itemsize)            # sublane packing: 8 f32, 16 bf16, 32 i8

    # Lane width: a multiple of 128 so every load/store is unmasked (lane-dense).
    if flat % 128 == 0:
        C = 128
        for c in range(128, min(flat, 2048) + 1, 128):
            if flat % c == 0:
                C = c
    else:
        C = 128                              # minimize zero padding for awkward widths

    rows = _round_up(flat, C) // C           # rows per batch element before padding

    # Row tile: packing-aligned and <= the generation-aware block budget.
    max_rows = max(pack, (max_block_bytes // (C * itemsize)) // pack * pack)
    tR = _round_up(rows, pack) if rows <= max_rows else max_rows
    Rp = _round_up(rows, tR)                 # pad rows to a whole number of tiles
    n_row_tiles = Rp // tR

    # v7x has two TensorCores: guarantee >= 2 steps on a parallel grid axis.
    if batch == 1:
        while n_row_tiles < 2 and tR > pack:
            tR = max(pack, (tR // 2) // pack * pack)
            Rp = _round_up(rows, tR)
            n_row_tiles = Rp // tR

    return C, tR, Rp, n_row_tiles


def _pe_add_kernel(x_ref, pe_ref, o_ref):
    # (tR, C) lane-dense VPU add: no broadcast, no relayout, no dtype promotion.
    o_ref[...] = x_ref[...] + pe_ref[...]


def _make_pe_spec(tR: int, C: int, buffer_count):
    idx = lambda r, b: (r, 0)
    if buffer_count is None:
        return pl.BlockSpec((tR, C), idx)
    try:
        return pl.BlockSpec((tR, C), idx, pipeline_mode=pl.Buffered(buffer_count))
    except Exception:                        # pipeline_mode / Buffered(1) unsupported
        return pl.BlockSpec((tR, C), idx)


def _build_call(B, Rp, C, tR, dtype, pe_buffer_count, vmem_limit, donate_x):
    n_row_tiles = Rp // tR
    extra = {"input_output_aliases": {0: 0}} if donate_x else {}
    return pl.pallas_call(
        _pe_add_kernel,
        out_shape=jax.ShapeDtypeStruct((B, Rp, C), dtype),
        grid_spec=pltpu.PrefetchScalarGridSpec(
            num_scalar_prefetch=0,
            # Batch innermost: the PE block index depends only on the outer row
            # axis, so the PE tile is fetched once per row-tile and held
            # resident across the inner batch loop.
            grid=(n_row_tiles, B),
            in_specs=[
                pl.BlockSpec((pl.Squeezed(), tR, C), lambda r, b: (b, r, 0)),
                _make_pe_spec(tR, C, pe_buffer_count),
            ],
            out_specs=pl.BlockSpec((pl.Squeezed(), tR, C), lambda r, b: (b, r, 0)),
        ),
        compiler_params=pltpu.CompilerParams(
            # Independent output tiles on both axes -> shardable across v7x's
            # two TensorCores; neutral on single-TC v5e/v6e.
            dimension_semantics=("parallel", "parallel"),
            vmem_limit_bytes=vmem_limit,
        ),
        **extra,
    )


class PositionalEncodingPallas:
    """Eval-mode PositionalEncoding: out = x + pe[:, :S, :] (dropout = identity)."""

    def __init__(self, d_model, max_length=5000, dropout=0.1, donate_input=False):
        self.d_model = d_model
        self.max_length = max_length
        self.dropout_p = dropout                 # identity in eval mode
        self.donate_input = donate_input
        self.pe = build_pe_table(d_model, max_length)   # (L, D) float32 buffer
        self._pe_cache = {}                      # layout-prepared PE slabs, per (S, dtype, C, Rp)

    def _prepared_pe(self, S, dtype, C, Rp):
        key = (int(S), jnp.dtype(dtype).name, int(C), int(Rp))
        slab = self._pe_cache.get(key)
        if slab is None:
            flat = S * self.d_model
            # NOTE: PE is cast to x.dtype before the add; PyTorch type promotion
            # would instead compute in f32 for sub-f32 inputs (minor divergence).
            pe_flat = self.pe[:S].astype(dtype).reshape(flat)
            pad = Rp * C - flat
            if pad:
                pe_flat = jnp.pad(pe_flat, (0, pad))
            slab = pe_flat.reshape(Rp, C)
            self._pe_cache[key] = slab
        return slab

    def __call__(self, x):
        B, S, D = x.shape
        assert D == self.d_model and S <= self.max_length
        flat = S * D

        max_block_bytes, vmem_limit = _hw_budgets()
        C, tR, Rp, _ = _plan_layout(flat, x.dtype, B, max_block_bytes)

        pe3 = self._prepared_pe(S, x.dtype, C, Rp)        # cached after first call

        # Row-major regrouping of the trailing dims (free when no padding needed).
        x2 = x.reshape(B, flat)
        pad = Rp * C - flat
        if pad:
            x2 = jnp.pad(x2, ((0, 0), (0, pad)))
        x3 = x2.reshape(B, Rp, C)

        pe_buffer_count = 1 if B >= 2 else None           # single-buffer resident PE
        try:
            out3 = _build_call(B, Rp, C, tR, x.dtype, pe_buffer_count,
                               vmem_limit, self.donate_input)(x3, pe3)
        except Exception:
            if pe_buffer_count is None:
                raise
            # Fallback: default double-buffered PE if single-buffering is rejected.
            out3 = _build_call(B, Rp, C, tR, x.dtype, None,
                               vmem_limit, self.donate_input)(x3, pe3)

        out = out3.reshape(B, Rp * C)[:, :flat].reshape(B, S, D)
        # TODO(synk): training-mode dropout (Bernoulli mask + 1/(1-p) scale) not implemented.
        return out


if __name__ == "__main__":
    # Small shapes consistent with the module: batch=2, seq=8, d_model=32.
    B, S, D = 2, 8, 32
    max_length = 64

    key = jax.random.PRNGKey(0)
    x = jax.random.normal(key, (B, S, D), dtype=jnp.float32)

    module = PositionalEncodingPallas(d_model=D, max_length=max_length, dropout=0.1)

    out = module(x)
    out = jax.block_until_ready(out)

    # Second call exercises the cached PE slab (no per-call PE slice/cast/reshape).
    out2 = jax.block_until_ready(module(x))

    # Reference check in plain JAX (identity dropout / eval mode).
    ref = x + module.pe[None, :S, :].astype(x.dtype)
    assert out.shape == (B, S, D)
    assert jnp.allclose(out, ref, atol=1e-6, rtol=1e-6), "mismatch vs reference"
    assert jnp.allclose(out2, ref, atol=1e-6, rtol=1e-6), "mismatch vs reference (cached)"

    print("KERNEL_OK")
</pallas_src>

<mosaic_0001>
module attributes {stable_mosaic.version = 11 : i64} {
  func.func @_pe_add_kernel(%arg0: i32, %arg1: i32, %arg2: memref<1x8x256xf32, #tpu.memory_space<vmem>>, %arg3: memref<8x256xf32, #tpu.memory_space<vmem>>, %arg4: memref<1x8x256xf32, #tpu.memory_space<vmem>>) attributes {dimension_semantics = [#tpu.dimension_semantics<parallel>, #tpu.dimension_semantics<parallel>], iteration_bounds = array<i64: 1, 2>, scalar_prefetch = 0 : i64, scratch_operands = 0 : i64, tpu.core_type = #tpu.core_type<tc>, window_params = [{transform_indices = @transform_0, window_bounds = array<i64: 1, 8, 256>}, {pipeline_mode = #tpu.pipeline_mode<synchronous>, transform_indices = @transform_1, window_bounds = array<i64: 8, 256>}, {transform_indices = @transform_2, window_bounds = array<i64: 1, 8, 256>}]} {
    %c0 = arith.constant 0 : index
    %c0_0 = arith.constant 0 : index
    %c0_1 = arith.constant 0 : index
    %0 = vector.load %arg2[%c0, %c0_0, %c0_1] : memref<1x8x256xf32, #tpu.memory_space<vmem>>, vector<1x8x256xf32>
    %1 = vector.shape_cast %0 : vector<1x8x256xf32> to vector<8x256xf32>
    %c0_2 = arith.constant 0 : index
    %c0_3 = arith.constant 0 : index
    %2 = vector.load %arg3[%c0_2, %c0_3] : memref<8x256xf32, #tpu.memory_space<vmem>>, vector<8x256xf32>
    %3 = arith.addf %1, %2 : vector<8x256xf32>
    %c0_4 = arith.constant 0 : index
    %c0_5 = arith.constant 0 : index
    %c0_6 = arith.constant 0 : index
    %4 = vector.load %arg4[%c0_4, %c0_5, %c0_6] : memref<1x8x256xf32, #tpu.memory_space<vmem>>, vector<1x8x256xf32>
    %5 = vector.shape_cast %4 : vector<1x8x256xf32> to vector<8x256xf32>
    %6 = vector.shape_cast %3 : vector<8x256xf32> to vector<1x8x256xf32>
    tpu.vector_store %arg4[%c0_4, %c0_5, %c0_6], %6 {strides = array<i32>} : memref<1x8x256xf32, #tpu.memory_space<vmem>>, vector<1x8x256xf32>,
    return
  }
  func.func @transform_0(%arg0: i32, %arg1: i32) -> (i32, i32, i32) {
    %c0_i32 = arith.constant 0 : i32
    %c0_i32_0 = arith.constant 0 : i32
    return %arg1, %arg0, %c0_i32 : i32, i32, i32
  }
  func.func @transform_1(%arg0: i32, %arg1: i32) -> (i32, i32) {
    %c0_i32 = arith.constant 0 : i32
    %c0_i32_0 = arith.constant 0 : i32
    return %arg0, %c0_i32 : i32, i32
  }
  func.func @transform_2(%arg0: i32, %arg1: i32) -> (i32, i32, i32) {
    %c0_i32 = arith.constant 0 : i32
    %c0_i32_0 = arith.constant 0 : i32
    return %arg1, %arg0, %c0_i32 : i32, i32, i32
  }
}

module attributes {stable_mosaic.version = 11 : i64} {
  func.func @_pe_add_kernel(%arg0: i32, %arg1: i32, %arg2: memref<1x8x256xf32, #tpu.memory_space<vmem>>, %arg3: memref<8x256xf32, #tpu.memory_space<vmem>>, %arg4: memref<1x8x256xf32, #tpu.memory_space<vmem>>) attributes {dimension_semantics = [#tpu.dimension_semantics<parallel>, #tpu.dimension_semantics<parallel>], iteration_bounds = array<i64: 1, 2>, scalar_prefetch = 0 : i64, scratch_operands = 0 : i64, tpu.core_type = #tpu.core_type<tc>, window_params = [{transform_indices = @transform_0, window_bounds = array<i64: 1, 8, 256>}, {transform_indices = @transform_1, window_bounds = array<i64: 8, 256>}, {transform_indices = @transform_2, window_bounds = array<i64: 1, 8, 256>}]} {
    %c0 = arith.constant 0 : index
    %c0_0 = arith.constant 0 : index
    %c0_1 = arith.constant 0 : index
    %0 = vector.load %arg2[%c0, %c0_0, %c0_1] : memref<1x8x256xf32, #tpu.memory_space<vmem>>, vector<1x8x256xf32>
    %1 = vector.shape_cast %0 : vector<1x8x256xf32> to vector<8x256xf32>
    %c0_2 = arith.constant 0 : index
    %c0_3 = arith.constant 0 : index
    %2 = vector.load %arg3[%c0_2, %c0_3] : memref<8x256xf32, #tpu.memory_space<vmem>>, vector<8x256xf32>
    %3 = arith.addf %1, %2 : vector<8x256xf32>
    %c0_4 = arith.constant 0 : index
    %c0_5 = arith.constant 0 : index
    %c0_6 = arith.constant 0 : index
    %4 = vector.load %arg4[%c0_4, %c0_5, %c0_6] : memref<1x8x256xf32, #tpu.memory_space<vmem>>, vector<1x8x256xf32>
    %5 = vector.shape_cast %4 : vector<1x8x256xf32> to vector<8x256xf32>
    %6 = vector.shape_cast %3 : vector<8x256xf32> to vector<1x8x256xf32>
    tpu.vector_store %arg4[%c0_4, %c0_5, %c0_6], %6 {strides = array<i32>} : memref<1x8x256xf32, #tpu.memory_space<vmem>>, vector<1x8x256xf32>,
    return
  }
  func.func @transform_0(%arg0: i32, %arg1: i32) -> (i32, i32, i32) {
    %c0_i32 = arith.constant 0 : i32
    %c0_i32_0 = arith.constant 0 : i32
    return %arg1, %arg0, %c0_i32 : i32, i32, i32
  }
  func.func @transform_1(%arg0: i32, %arg1: i32) -> (i32, i32) {
    %c0_i32 = arith.constant 0 : i32
    %c0_i32_0 = arith.constant 0 : i32
    return %arg0, %c0_i32 : i32, i32
  }
  func.func @transform_2(%arg0: i32, %arg1: i32) -> (i32, i32, i32) {
    %c0_i32 = arith.constant 0 : i32
    %c0_i32_0 = arith.constant 0 : i32
    return %arg1, %arg0, %c0_i32 : i32, i32, i32
  }
}

</mosaic_0001>

<llo_original>
// kernel: tpu_custom_call.1
$region0: #{tpu_custom_call.1}
  #allocation0 [shape = 'u32[]', space=smem, size = 0x4, offset = 0x4, fixed_abs, tag = 'smem constant byte address 0x4 - core index']
  #allocation1 [shape = 'u32[144,128]{1,0:T(1,128)}', space=vmem, size = 0x12000, scoped, tag = 'internal scratch']
  %s0 = inlined_call_operand.hbm [shape: f32[2,8,256], index: 0, kind: input, shape index: {}]
  %s1 = inlined_call_operand.hbm [shape: f32[8,256], index: 1, kind: input, shape index: {}]
  %s2 = inlined_call_operand.hbm [shape: f32[2,8,256], index: 2, kind: output, shape index: {}]
  %s3 = sld [smem:[#allocation0]]
  $region49: #{tpu_custom_call.1} parent=0
    _
  %s5 = ssub.s32 1, %s3
  %s6 = scalar_select 0, %s5, %s3
  $region1: #{tpu_custom_call.1} parent=0
    #allocation2 [shape = 'u8[16384]{0}', space=vmem, size = 0x4000, scoped, tag = 'input window, operand 0']
    #allocation3 [shape = 's32[2]{0}', space=sflag, size = 0x8, scoped, tag = 'scoped memory for tpu_custom_call.1']
    #allocation4 [shape = 's32[2]{0}', space=sflag, size = 0x8, scoped, tag = 'scoped memory for tpu_custom_call.1']
    #allocation5 [shape = 'u8[8192]{0}', space=vmem, size = 0x2000, scoped, tag = 'input window, operand 1, single buffered']
    #allocation6 [shape = 's32[1]{0}', space=sflag, size = 0x4, scoped, tag = 'scoped memory for tpu_custom_call.1']
    #allocation7 [shape = 'u8[16384]{0}', space=vmem, size = 0x4000, scoped, tag = 'output window, operand 0']
    %7 = vsyncpa [#allocation3], 0
    %s8 = scalar_lea.sflag [#allocation3], 1
    %9 = vsyncpa %s8, 0
    %10 = vsyncpa [#allocation6], 0
    %11 = vsyncpa [#allocation4], 0
    %s12 = scalar_lea.sflag [#allocation4], 1
    %13 = vsyncpa %s12, 0
    loop: start=0, step=1, limit=4
    $region2: #{tpu_custom_call.1} parent=1 // loop_pre_header
      _
    $region3: #{tpu_custom_call.1} parent=1 // loop_header
      %s15 = sphi 0, %s19
      %p16 = scmp.ge.s32.totalorder %s15, 4
      %s22 = sphi 0, %s34
      %s23 = sphi 0, %s30
      %s24 = sphi 0, %s22
      %s25 = sphi 0, %s23
      %s26 = sphi 0, %s24
      %s27 = sphi 0, %s25
      %s39 = sphi 0, %s41
      %s42 = sphi 0, %s39
      %s43 = sphi 0, %s42
      %s59 = sphi 0, %s43
      %s65 = sphi 0, %s67
      %s68 = sphi 0, %s65
      %s69 = sphi 0, %s68
      %s85 = sphi 0, %s69
      %s93 = sphi 0, %s95
      %s96 = sphi 0, %s93
      %s97 = sphi 0, %s96
      %s113 = sphi 0, %s97
    $region4: #{tpu_custom_call.1} parent=1 // loop_header_branch
      %18 = sbr.rel (%p16) target = $region8
    $region5: #{tpu_custom_call.1} parent=1 // loop_body
      %s20 = ssub.s32 %s15, 1
      %s21 = ssub.s32 %s15, 2
      %s28 = sadd.s32 1, %s23
      %p29 = scmp.ge.s32.totalorder %s28, 2
      %s30 = scalar_select %p29, 0, %s28
      %s31 = sadd.s32 1, %s22
      %s32 = scalar_select %p29, %s31, %s22
      %p33 = scmp.ge.s32.totalorder %s32, 1
      %s34 = scalar_select %p33, 0, %s32
      %s35 = ssub.s32 %s23, %s30
      %s36 = ssub.s32 %s22, %s34
      %s37 = sor.u32 %s35, %s36
      %p38 = scmp.eq.s32.totalorder %s37, 0
      %s40 = sadd.s32 %s39, 1
      %s41 = scalar_select %p38, %s39, %s40
      %p44 = pneg %p38
      %p45 = scmp.eq.s32.totalorder %s15, 1
      %p46 = por %p44, %p45
      %p47 = scmp.ne.s32.totalorder %s39, %s42
      %p48 = scmp.eq.s32.totalorder %s15, 0
      %p49 = por %p47, %p48
      %p50 = scmp.ne.s32.totalorder %s39, %s42
      %p51 = scmp.eq.s32.totalorder %s20, 1
      %p52 = por %p50, %p51
      %p53 = scmp.ne.s32.totalorder %s42, %s43
      %p54 = scmp.eq.s32.totalorder %s20, 0
      %p55 = por %p53, %p54
      %p56 = scmp.ne.s32.totalorder %s42, %s43
      %p57 = scmp.eq.s32.totalorder %s21, 1
      %p58 = por %p56, %p57
      %p60 = scmp.ne.s32.totalorder %s43, %s59
      %p61 = scmp.eq.s32.totalorder %s21, 0
      %p62 = por %p60, %p61
      %s63 = ssub.s32 %s22, %s34
      %p64 = scmp.eq.s32.totalorder %s63, 0
      %s66 = sadd.s32 %s65, 1
      %s67 = scalar_select %p64, %s65, %s66
      %p70 = pneg %p64
      %p71 = scmp.eq.s32.totalorder %s15, 1
      %p72 = por %p70, %p71
      %p73 = scmp.ne.s32.totalorder %s65, %s68
      %p74 = scmp.eq.s32.totalorder %s15, 0
      %p75 = por %p73, %p74
      %p76 = scmp.ne.s32.totalorder %s65, %s68
      %p77 = scmp.eq.s32.totalorder %s20, 1
      %p78 = por %p76, %p77
      %p79 = scmp.ne.s32.totalorder %s68, %s69
      %p80 = scmp.eq.s32.totalorder %s20, 0
      %p81 = por %p79, %p80
      %p82 = scmp.ne.s32.totalorder %s68, %s69
      %p83 = scmp.eq.s32.totalorder %s21, 1
      %p84 = por %p82, %p83
      %p86 = scmp.ne.s32.totalorder %s69, %s85
      %p87 = scmp.eq.s32.totalorder %s21, 0
      %p88 = por %p86, %p87
      %s89 = ssub.s32 %s23, %s30
      %s90 = ssub.s32 %s22, %s34
      %s91 = sor.u32 %s89, %s90
      %p92 = scmp.eq.s32.totalorder %s91, 0
      %s94 = sadd.s32 %s93, 1
      %s95 = scalar_select %p92, %s93, %s94
      %p98 = pneg %p92
      %p99 = scmp.eq.s32.totalorder %s15, 1
      %p100 = por %p98, %p99
      %p101 = scmp.ne.s32.totalorder %s93, %s96
      %p102 = scmp.eq.s32.totalorder %s15, 0
      %p103 = por %p101, %p102
      %p104 = scmp.ne.s32.totalorder %s93, %s96
      %p105 = scmp.eq.s32.totalorder %s20, 1
      %p106 = por %p104, %p105
      %p107 = scmp.ne.s32.totalorder %s96, %s97
      %p108 = scmp.eq.s32.totalorder %s20, 0
      %p109 = por %p107, %p108
      %p110 = scmp.ne.s32.totalorder %s96, %s97
      %p111 = scmp.eq.s32.totalorder %s21, 1
      %p112 = por %p110, %p111
      %p114 = scmp.ne.s32.totalorder %s97, %s113
      %p115 = scmp.eq.s32.totalorder %s21, 0
      %p116 = por %p114, %p115
      %p117 = scmp.le.s32.totalorder 1, %s15
      %p118 = scmp.lt.s32.totalorder %s15, 3
      %p119 = pnand %p117, %p118
      %p120 = pneg %p119
      // Predicated region
      $region9: #{tpu_custom_call.1} parent=5 // pred_check
        _
      $region10: #{tpu_custom_call.1} parent=5 // pred_check_branch
        %122 = sbr.rel (%p119) target = $region12
      $region11: #{tpu_custom_call.1} parent=5 // pred_region
        %s123 = ssub.s32 %s15, 1
        // Predicated region
        $region13: #{tpu_custom_call.1} parent=11 // pred_check
          %p124 = pneg %p81
        $region14: #{tpu_custom_call.1} parent=11 // pred_check_branch
          %126 = sbr.rel (%p124) target = $region16
        $region15: #{tpu_custom_call.1} parent=11 // pred_region
          %s128 = ssub.s32 256, 256
          %129 = vsyncadd [#allocation6], %s128
          %s130 = smul.addr %s24, 2
          %s131 = smul.addr %s130, 128
          %s132 = scalar_lea.hbm %s1, %s131
          %s134 = sshll.u32 [#allocation5], 4
          %s135 = int_to_ptr.vmem [resolvable:$true] %s134
          %137 = dma.hbm_to_vmem [thread:$0]  %s132, 256, %s135, [#allocation6]
        $region16: #{tpu_custom_call.1} parent=11 // pred_fallthru
          _
      $region12: #{tpu_custom_call.1} parent=5 // pred_fallthru
        _
      %p138 = scmp.lt.s32.totalorder %s15, 2
      // Predicated region
      $region17: #{tpu_custom_call.1} parent=5 // pred_check
        %p139 = pneg %p138
      $region18: #{tpu_custom_call.1} parent=5 // pred_check_branch
        %141 = sbr.rel (%p139) target = $region20
      $region19: #{tpu_custom_call.1} parent=5 // pred_region
        // Predicated region
        $region21: #{tpu_custom_call.1} parent=19 // pred_check
          %p142 = pneg %p49
        $region22: #{tpu_custom_call.1} parent=19 // pred_check_branch
          %144 = sbr.rel (%p142) target = $region24
        $region23: #{tpu_custom_call.1} parent=19 // pred_region
          %s145 = sand.u32 %s39, 1
          %s146 = scalar_lea.sflag [#allocation3], %s145
          %s147 = sand.u32 %s39, 1
          %s148 = smul.addr %s147, 16
          %s149 = scalar_lea.vmem [#allocation2], %s148
          %s151 = ssub.s32 256, 256
          %152 = vsyncadd %s146, %s151
          %s153 = smul.addr %s22, 2
          %s154 = smul.addr %s23, 2
          %s155 = sadd.s32 %s153, %s154
          %s156 = smul.addr %s155, 128
          %s157 = scalar_lea.hbm %s0, %s156
          %s159 = sshll.u32 %s149, 4
          %s160 = int_to_ptr.vmem [resolvable:$true] %s159
          %162 = dma.hbm_to_vmem [thread:$0]  %s157, 256, %s160, %s146
        $region24: #{tpu_custom_call.1} parent=19 // pred_fallthru
          _
      $region20: #{tpu_custom_call.1} parent=5 // pred_fallthru
        _
      %p163 = scmp.le.s32.totalorder 1, %s15
      %p164 = scmp.lt.s32.totalorder %s15, 3
      %p165 = pnand %p163, %p164
      %p166 = pneg %p165
      // Predicated region
      $region25: #{tpu_custom_call.1} parent=5 // pred_check
        _
      $region26: #{tpu_custom_call.1} parent=5 // pred_check_branch
        %168 = sbr.rel (%p165) target = $region28
      $region27: #{tpu_custom_call.1} parent=5 // pred_region
        %s169 = ssub.s32 %s15, 1
        %s170 = sand.u32 %s42, 1
        %s171 = scalar_lea.sflag [#allocation3], %s170
        %s172 = sand.u32 %s42, 1
        %s173 = smul.addr %s172, 16
        %s174 = scalar_lea.vmem [#allocation2], %s173
        // Predicated region
        $region29: #{tpu_custom_call.1} parent=27 // pred_check
          %p175 = pneg %p55
        $region30: #{tpu_custom_call.1} parent=27 // pred_check_branch
          %177 = sbr.rel (%p175) target = $region32
        $region31: #{tpu_custom_call.1} parent=27 // pred_region
          %178 = dma.done %s171, 256
        $region32: #{tpu_custom_call.1} parent=27 // pred_fallthru
          _
        // Predicated region
        $region33: #{tpu_custom_call.1} parent=27 // pred_check
          %p179 = pneg %p81
        $region34: #{tpu_custom_call.1} parent=27 // pred_check_branch
          %181 = sbr.rel (%p179) target = $region36
        $region35: #{tpu_custom_call.1} parent=27 // pred_region
          %182 = dma.done [#allocation6], 256
        $region36: #{tpu_custom_call.1} parent=27 // pred_fallthru
          _
        %s183 = sand.u32 %s42, 1
        %s184 = scalar_lea.sflag [#allocation3], %s183
        %s185 = sand.u32 %s42, 1
        %s186 = smul.addr %s185, 16
        %s187 = scalar_lea.vmem [#allocation2], %s186
        %p188 = pneg %p55
        %p189 = pneg %p52
        %p190 = pneg %p81
        %p191 = pneg %p78
        %p192 = pneg %p109
        %p193 = pneg %p106
        %s194 = sand.u32 %s96, 1
        %s195 = scalar_lea.sflag [#allocation4], %s194
        %s196 = sand.u32 %s96, 1
        %s197 = smul.addr %s196, 16
        %s198 = scalar_lea.vmem [#allocation7], %s197
        %v199 = vld [vmem:[%s174] sm:$0xff]
        %v200 = vld [vmem:[%s174 + $0x8] sm:$0xff]
        %v201 = vld [vmem:[#allocation5] sm:$0xff]
        %v202 = vld [vmem:[#allocation5 + $0x8] sm:$0xff]
        %v203 = vadd.f32 %v199, %v201
        %v204 = vadd.f32 %v200, %v202
        %205 = vst [vmem:[%s198] sm:$0xff] %v203
        %206 = vst [vmem:[%s198 + $0x8] sm:$0xff] %v204
        %s207 = sand.u32 %s96, 1
        %s208 = scalar_lea.sflag [#allocation4], %s207
        %s209 = sand.u32 %s96, 1
        %s210 = smul.addr %s209, 16
        %s211 = scalar_lea.vmem [#allocation7], %s210
        // Predicated region
        $region37: #{tpu_custom_call.1} parent=27 // pred_check
          %p212 = pneg %p106
        $region38: #{tpu_custom_call.1} parent=27 // pred_check_branch
          %214 = sbr.rel (%p212) target = $region40
        $region39: #{tpu_custom_call.1} parent=27 // pred_region
          %s216 = ssub.s32 256, 256
          %217 = vsyncadd %s208, %s216
          %s218 = smul.addr %s24, 2
          %s219 = smul.addr %s25, 2
          %s220 = sadd.s32 %s218, %s219
          %s221 = smul.addr %s220, 128
          %s222 = scalar_lea.hbm %s2, %s221
          %s224 = sshll.u32 %s211, 4
          %s225 = int_to_ptr.vmem [resolvable:$true] %s224
          %227 = dma.vmem_to_hbm [thread:$0]  %s225, 256, %s222, %s208
        $region40: #{tpu_custom_call.1} parent=27 // pred_fallthru
          _
      $region28: #{tpu_custom_call.1} parent=5 // pred_fallthru
        _
      %p228 = scmp.le.s32.totalorder 2, %s15
      // Predicated region
      $region41: #{tpu_custom_call.1} parent=5 // pred_check
        %p229 = pneg %p228
      $region42: #{tpu_custom_call.1} parent=5 // pred_check_branch
        %231 = sbr.rel (%p229) target = $region44
      $region43: #{tpu_custom_call.1} parent=5 // pred_region
        %s232 = ssub.s32 %s15, 2
        // Predicated region
        $region45: #{tpu_custom_call.1} parent=43 // pred_check
          %p233 = pneg %p112
        $region46: #{tpu_custom_call.1} parent=43 // pred_check_branch
          %235 = sbr.rel (%p233) target = $region48
        $region47: #{tpu_custom_call.1} parent=43 // pred_region
          %s236 = sand.u32 %s97, 1
          %s237 = scalar_lea.sflag [#allocation4], %s236
          %s238 = sand.u32 %s97, 1
          %s239 = smul.addr %s238, 16
          %s240 = scalar_lea.vmem [#allocation7], %s239
          %241 = dma.done %s237, 256
        $region48: #{tpu_custom_call.1} parent=43 // pred_fallthru
          _
      $region44: #{tpu_custom_call.1} parent=5 // pred_fallthru
        _
    $region6: #{tpu_custom_call.1} parent=1 // loop_footer
      %s19 = sadd.s32 1, %s15
    $region7: #{tpu_custom_call.1} parent=1 // loop_footer_branch
      %14 = sbr.rel target = $region3
    $region8: #{tpu_custom_call.1} parent=1 // loop_exit
      _
    %242 = vsyncpa [#allocation3], 1
    %s243 = scalar_lea.sflag [#allocation3], 1
    %244 = vsyncpa %s243, 1
    %245 = vsyncpa [#allocation6], 1
    %246 = vsyncpa [#allocation4], 1
    %s247 = scalar_lea.sflag [#allocation4], 1
    %248 = vsyncpa %s247, 1

// kernel: tpu_custom_call.1
$region0: #{tpu_custom_call.1}
  #allocation0 [shape = 'u32[]', space=smem, size = 0x4, offset = 0x4, fixed_abs, tag = 'smem constant byte address 0x4 - core index']
  #allocation1 [shape = 'u32[144,128]{1,0:T(1,128)}', space=vmem, size = 0x12000, scoped, tag = 'internal scratch']
  %s0 = inlined_call_operand.hbm [shape: f32[2,8,256], index: 0, kind: input, shape index: {}]
  %s1 = inlined_call_operand.hbm [shape: f32[8,256], index: 1, kind: input, shape index: {}]
  %s2 = inlined_call_operand.hbm [shape: f32[2,8,256], index: 2, kind: output, shape index: {}]
  %s3 = sld [smem:[#allocation0]]
  $region49: #{tpu_custom_call.1} parent=0
    _
  %s5 = ssub.s32 1, %s3
  %s6 = scalar_select 0, %s5, %s3
  $region1: #{tpu_custom_call.1} parent=0
    #allocation2 [shape = 'u8[16384]{0}', space=vmem, size = 0x4000, scoped, tag = 'input window, operand 0']
    #allocation3 [shape = 's32[2]{0}', space=sflag, size = 0x8, scoped, tag = 'scoped memory for tpu_custom_call.1']
    #allocation4 [shape = 's32[2]{0}', space=sflag, size = 0x8, scoped, tag = 'scoped memory for tpu_custom_call.1']
    #allocation5 [shape = 'u8[8192]{0}', space=vmem, size = 0x2000, scoped, tag = 'input window, operand 1, single buffered']
    #allocation6 [shape = 's32[1]{0}', space=sflag, size = 0x4, scoped, tag = 'scoped memory for tpu_custom_call.1']
    #allocation7 [shape = 'u8[16384]{0}', space=vmem, size = 0x4000, scoped, tag = 'output window, operand 0']
    %7 = vsyncpa [#allocation3], 0
    %s8 = scalar_lea.sflag [#allocation3], 1
    %9 = vsyncpa %s8, 0
    %10 = vsyncpa [#allocation6], 0
    %11 = vsyncpa [#allocation4], 0
    %s12 = scalar_lea.sflag [#allocation4], 1
    %13 = vsyncpa %s12, 0
    loop: start=0, step=1, limit=4
    $region2: #{tpu_custom_call.1} parent=1 // loop_pre_header
      _
    $region3: #{tpu_custom_call.1} parent=1 // loop_header
      %s15 = sphi 0, %s19
      %p16 = scmp.ge.s32.totalorder %s15, 4
      %s22 = sphi 0, %s34
      %s23 = sphi 0, %s30
      %s24 = sphi 0, %s22
      %s25 = sphi 0, %s23
      %s26 = sphi 0, %s24
      %s27 = sphi 0, %s25
      %s39 = sphi 0, %s41
      %s42 = sphi 0, %s39
      %s43 = sphi 0, %s42
      %s59 = sphi 0, %s43
      %s65 = sphi 0, %s67
      %s68 = sphi 0, %s65
      %s69 = sphi 0, %s68
      %s85 = sphi 0, %s69
      %s93 = sphi 0, %s95
      %s96 = sphi 0, %s93
      %s97 = sphi 0, %s96
      %s113 = sphi 0, %s97
    $region4: #{tpu_custom_call.1} parent=1 // loop_header_branch
      %18 = sbr.rel (%p16) target = $region8
    $region5: #{tpu_custom_call.1} parent=1 // loop_body
      %s20 = ssub.s32 %s15, 1
      %s21 = ssub.s32 %s15, 2
      %s28 = sadd.s32 1, %s23
      %p29 = scmp.ge.s32.totalorder %s28, 2
      %s30 = scalar_select %p29, 0, %s28
      %s31 = sadd.s32 1, %s22
      %s32 = scalar_select %p29, %s31, %s22
      %p33 = scmp.ge.s32.totalorder %s32, 1
      %s34 = scalar_select %p33, 0, %s32
      %s35 = ssub.s32 %s23, %s30
      %s36 = ssub.s32 %s22, %s34
      %s37 = sor.u32 %s35, %s36
      %p38 = scmp.eq.s32.totalorder %s37, 0
      %s40 = sadd.s32 %s39, 1
      %s41 = scalar_select %p38, %s39, %s40
      %p44 = pneg %p38
      %p45 = scmp.eq.s32.totalorder %s15, 1
      %p46 = por %p44, %p45
      %p47 = scmp.ne.s32.totalorder %s39, %s42
      %p48 = scmp.eq.s32.totalorder %s15, 0
      %p49 = por %p47, %p48
      %p50 = scmp.ne.s32.totalorder %s39, %s42
      %p51 = scmp.eq.s32.totalorder %s20, 1
      %p52 = por %p50, %p51
      %p53 = scmp.ne.s32.totalorder %s42, %s43
      %p54 = scmp.eq.s32.totalorder %s20, 0
      %p55 = por %p53, %p54
      %p56 = scmp.ne.s32.totalorder %s42, %s43
      %p57 = scmp.eq.s32.totalorder %s21, 1
      %p58 = por %p56, %p57
      %p60 = scmp.ne.s32.totalorder %s43, %s59
      %p61 = scmp.eq.s32.totalorder %s21, 0
      %p62 = por %p60, %p61
      %s63 = ssub.s32 %s22, %s34
      %p64 = scmp.eq.s32.totalorder %s63, 0
      %s66 = sadd.s32 %s65, 1
      %s67 = scalar_select %p64, %s65, %s66
      %p70 = pneg %p64
      %p71 = scmp.eq.s32.totalorder %s15, 1
      %p72 = por %p70, %p71
      %p73 = scmp.ne.s32.totalorder %s65, %s68
      %p74 = scmp.eq.s32.totalorder %s15, 0
      %p75 = por %p73, %p74
      %p76 = scmp.ne.s32.totalorder %s65, %s68
      %p77 = scmp.eq.s32.totalorder %s20, 1
      %p78 = por %p76, %p77
      %p79 = scmp.ne.s32.totalorder %s68, %s69
      %p80 = scmp.eq.s32.totalorder %s20, 0
      %p81 = por %p79, %p80
      %p82 = scmp.ne.s32.totalorder %s68, %s69
      %p83 = scmp.eq.s32.totalorder %s21, 1
      %p84 = por %p82, %p83
      %p86 = scmp.ne.s32.totalorder %s69, %s85
      %p87 = scmp.eq.s32.totalorder %s21, 0
      %p88 = por %p86, %p87
      %s89 = ssub.s32 %s23, %s30
      %s90 = ssub.s32 %s22, %s34
      %s91 = sor.u32 %s89, %s90
      %p92 = scmp.eq.s32.totalorder %s91, 0
      %s94 = sadd.s32 %s93, 1
      %s95 = scalar_select %p92, %s93, %s94
      %p98 = pneg %p92
      %p99 = scmp.eq.s32.totalorder %s15, 1
      %p100 = por %p98, %p99
      %p101 = scmp.ne.s32.totalorder %s93, %s96
      %p102 = scmp.eq.s32.totalorder %s15, 0
      %p103 = por %p101, %p102
      %p104 = scmp.ne.s32.totalorder %s93, %s96
      %p105 = scmp.eq.s32.totalorder %s20, 1
      %p106 = por %p104, %p105
      %p107 = scmp.ne.s32.totalorder %s96, %s97
      %p108 = scmp.eq.s32.totalorder %s20, 0
      %p109 = por %p107, %p108
      %p110 = scmp.ne.s32.totalorder %s96, %s97
      %p111 = scmp.eq.s32.totalorder %s21, 1
      %p112 = por %p110, %p111
      %p114 = scmp.ne.s32.totalorder %s97, %s113
      %p115 = scmp.eq.s32.totalorder %s21, 0
      %p116 = por %p114, %p115
      %p117 = scmp.le.s32.totalorder 1, %s15
      %p118 = scmp.lt.s32.totalorder %s15, 3
      %p119 = pnand %p117, %p118
      %p120 = pneg %p119
      // Predicated region
      $region9: #{tpu_custom_call.1} parent=5 // pred_check
        _
      $region10: #{tpu_custom_call.1} parent=5 // pred_check_branch
        %122 = sbr.rel (%p119) target = $region12
      $region11: #{tpu_custom_call.1} parent=5 // pred_region
        %s123 = ssub.s32 %s15, 1
        // Predicated region
        $region13: #{tpu_custom_call.1} parent=11 // pred_check
          %p124 = pneg %p81
        $region14: #{tpu_custom_call.1} parent=11 // pred_check_branch
          %126 = sbr.rel (%p124) target = $region16
        $region15: #{tpu_custom_call.1} parent=11 // pred_region
          %s128 = ssub.s32 256, 256
          %129 = vsyncadd [#allocation6], %s128
          %s130 = smul.addr %s24, 2
          %s131 = smul.addr %s130, 128
          %s132 = scalar_lea.hbm %s1, %s131
          %s134 = sshll.u32 [#allocation5], 4
          %s135 = int_to_ptr.vmem [resolvable:$true] %s134
          %137 = dma.hbm_to_vmem [thread:$0]  %s132, 256, %s135, [#allocation6]
        $region16: #{tpu_custom_call.1} parent=11 // pred_fallthru
          _
      $region12: #{tpu_custom_call.1} parent=5 // pred_fallthru
        _
      %p138 = scmp.lt.s32.totalorder %s15, 2
      // Predicated region
      $region17: #{tpu_custom_call.1} parent=5 // pred_check
        %p139 = pneg %p138
      $region18: #{tpu_custom_call.1} parent=5 // pred_check_branch
        %141 = sbr.rel (%p139) target = $region20
      $region19: #{tpu_custom_call.1} parent=5 // pred_region
        // Predicated region
        $region21: #{tpu_custom_call.1} parent=19 // pred_check
          %p142 = pneg %p49
        $region22: #{tpu_custom_call.1} parent=19 // pred_check_branch
          %144 = sbr.rel (%p142) target = $region24
        $region23: #{tpu_custom_call.1} parent=19 // pred_region
          %s145 = sand.u32 %s39, 1
          %s146 = scalar_lea.sflag [#allocation3], %s145
          %s147 = sand.u32 %s39, 1
          %s148 = smul.addr %s147, 16
          %s149 = scalar_lea.vmem [#allocation2], %s148
          %s151 = ssub.s32 256, 256
          %152 = vsyncadd %s146, %s151
          %s153 = smul.addr %s22, 2
          %s154 = smul.addr %s23, 2
          %s155 = sadd.s32 %s153, %s154
          %s156 = smul.addr %s155, 128
          %s157 = scalar_lea.hbm %s0, %s156
          %s159 = sshll.u32 %s149, 4
          %s160 = int_to_ptr.vmem [resolvable:$true] %s159
          %162 = dma.hbm_to_vmem [thread:$0]  %s157, 256, %s160, %s146
        $region24: #{tpu_custom_call.1} parent=19 // pred_fallthru
          _
      $region20: #{tpu_custom_call.1} parent=5 // pred_fallthru
        _
      %p163 = scmp.le.s32.totalorder 1, %s15
      %p164 = scmp.lt.s32.totalorder %s15, 3
      %p165 = pnand %p163, %p164
      %p166 = pneg %p165
      // Predicated region
      $region25: #{tpu_custom_call.1} parent=5 // pred_check
        _
      $region26: #{tpu_custom_call.1} parent=5 // pred_check_branch
        %168 = sbr.rel (%p165) target = $region28
      $region27: #{tpu_custom_call.1} parent=5 // pred_region
        %s169 = ssub.s32 %s15, 1
        %s170 = sand.u32 %s42, 1
        %s171 = scalar_lea.sflag [#allocation3], %s170
        %s172 = sand.u32 %s42, 1
        %s173 = smul.addr %s172, 16
        %s174 = scalar_lea.vmem [#allocation2], %s173
        // Predicated region
        $region29: #{tpu_custom_call.1} parent=27 // pred_check
          %p175 = pneg %p55
        $region30: #{tpu_custom_call.1} parent=27 // pred_check_branch
          %177 = sbr.rel (%p175) target = $region32
        $region31: #{tpu_custom_call.1} parent=27 // pred_region
          %178 = dma.done %s171, 256
        $region32: #{tpu_custom_call.1} parent=27 // pred_fallthru
          _
        // Predicated region
        $region33: #{tpu_custom_call.1} parent=27 // pred_check
          %p179 = pneg %p81
        $region34: #{tpu_custom_call.1} parent=27 // pred_check_branch
          %181 = sbr.rel (%p179) target = $region36
        $region35: #{tpu_custom_call.1} parent=27 // pred_region
          %182 = dma.done [#allocation6], 256
        $region36: #{tpu_custom_call.1} parent=27 // pred_fallthru
          _
        %s183 = sand.u32 %s42, 1
        %s184 = scalar_lea.sflag [#allocation3], %s183
        %s185 = sand.u32 %s42, 1
        %s186 = smul.addr %s185, 16
        %s187 = scalar_lea.vmem [#allocation2], %s186
        %p188 = pneg %p55
        %p189 = pneg %p52
        %p190 = pneg %p81
        %p191 = pneg %p78
        %p192 = pneg %p109
        %p193 = pneg %p106
        %s194 = sand.u32 %s96, 1
        %s195 = scalar_lea.sflag [#allocation4], %s194
        %s196 = sand.u32 %s96, 1
        %s197 = smul.addr %s196, 16
        %s198 = scalar_lea.vmem [#allocation7], %s197
        %v199 = vld [vmem:[%s174] sm:$0xff]
        %v200 = vld [vmem:[%s174 + $0x8] sm:$0xff]
        %v201 = vld [vmem:[#allocation5] sm:$0xff]
        %v202 = vld [vmem:[#allocation5 + $0x8] sm:$0xff]
        %v203 = vadd.f32 %v199, %v201
        %v204 = vadd.f32 %v200, %v202
        %205 = vst [vmem:[%s198] sm:$0xff] %v203
        %206 = vst [vmem:[%s198 + $0x8] sm:$0xff] %v204
        %s207 = sand.u32 %s96, 1
        %s208 = scalar_lea.sflag [#allocation4], %s207
        %s209 = sand.u32 %s96, 1
        %s210 = smul.addr %s209, 16
        %s211 = scalar_lea.vmem [#allocation7], %s210
        // Predicated region
        $region37: #{tpu_custom_call.1} parent=27 // pred_check
          %p212 = pneg %p106
        $region38: #{tpu_custom_call.1} parent=27 // pred_check_branch
          %214 = sbr.rel (%p212) target = $region40
        $region39: #{tpu_custom_call.1} parent=27 // pred_region
          %s216 = ssub.s32 256, 256
          %217 = vsyncadd %s208, %s216
          %s218 = smul.addr %s24, 2
          %s219 = smul.addr %s25, 2
          %s220 = sadd.s32 %s218, %s219
          %s221 = smul.addr %s220, 128
          %s222 = scalar_lea.hbm %s2, %s221
          %s224 = sshll.u32 %s211, 4
          %s225 = int_to_ptr.vmem [resolvable:$true] %s224
          %227 = dma.vmem_to_hbm [thread:$0]  %s225, 256, %s222, %s208
        $region40: #{tpu_custom_call.1} parent=27 // pred_fallthru
          _
      $region28: #{tpu_custom_call.1} parent=5 // pred_fallthru
        _
      %p228 = scmp.le.s32.totalorder 2, %s15
      // Predicated region
      $region41: #{tpu_custom_call.1} parent=5 // pred_check
        %p229 = pneg %p228
      $region42: #{tpu_custom_call.1} parent=5 // pred_check_branch
        %231 = sbr.rel (%p229) target = $region44
      $region43: #{tpu_custom_call.1} parent=5 // pred_region
        %s232 = ssub.s32 %s15, 2
        // Predicated region
        $region45: #{tpu_custom_call.1} parent=43 // pred_check
          %p233 = pneg %p112
        $region46: #{tpu_custom_call.1} parent=43 // pred_check_branch
          %235 = sbr.rel (%p233) target = $region48
        $region47: #{tpu_custom_call.1} parent=43 // pred_region
          %s236 = sand.u32 %s97, 1
          %s237 = scalar_lea.sflag [#allocation4], %s236
          %s238 = sand.u32 %s97, 1
          %s239 = smul.addr %s238, 16
          %s240 = scalar_lea.vmem [#allocation7], %s239
          %241 = dma.done %s237, 256
        $region48: #{tpu_custom_call.1} parent=43 // pred_fallthru
          _
      $region44: #{tpu_custom_call.1} parent=5 // pred_fallthru
        _
    $region6: #{tpu_custom_call.1} parent=1 // loop_footer
      %s19 = sadd.s32 1, %s15
    $region7: #{tpu_custom_call.1} parent=1 // loop_footer_branch
      %14 = sbr.rel target = $region3
    $region8: #{tpu_custom_call.1} parent=1 // loop_exit
      _
    %242 = vsyncpa [#allocation3], 1
    %s243 = scalar_lea.sflag [#allocation3], 1
    %244 = vsyncpa %s243, 1
    %245 = vsyncpa [#allocation6], 1
    %246 = vsyncpa [#allocation4], 1
    %s247 = scalar_lea.sflag [#allocation4], 1
    %248 = vsyncpa %s247, 1

</llo_original>
